<compile_context>
chip_gen: v7x
topology: tpu7x:2x2x1
jax: 0.10.0
libtpu: 0.0.40
codegen_flags: <defaults>
</compile_context>

<pallas_src>
import functools

import jax
import jax.numpy as jnp
import numpy as np
from jax.experimental import pallas as pl
from jax.experimental.pallas import tpu as pltpu

FP8_DTYPE = jnp.float8_e4m3fn
FP8_MAX = float(jnp.finfo(FP8_DTYPE).max)  # 448.0


def _round_up(x, m):
    return (x + m - 1) // m * m


def _fp8_linear_kernel(x_ref, w_ref, ws_ref, *rest, has_bias: bool):
    # x_ref : (tm, K)   activations (bf16/f32), resident across the j axis
    # w_ref : (K, tn)   fp8_e4m3fn quantized weight tile (pre-transposed, lane-dense)
    # ws_ref: (1, tn)   per-output-channel weight scale (f32)
    # b_ref : (1, tn)   bias (f32)            -- only when has_bias
    # o_ref : (tm, tn)  output tile (input dtype)
    # xq_ref: (tm, K)   VMEM scratch: quantized activations widened to bf16
    # xs_ref: (tm, 1)   VMEM scratch: per-token scale (f32)
    if has_bias:
        b_ref, o_ref, xq_ref, xs_ref = rest
    else:
        o_ref, xq_ref, xs_ref = rest
        b_ref = None

    # Dynamic per-token quantization, hoisted: runs once per row block
    # (grid j axis is "arbitrary", scratch persists across j).
    @pl.when(pl.program_id(1) == 0)
    def _quantize():
        x = x_ref[...].astype(jnp.float32)
        x_scale = (jnp.max(jnp.abs(x), axis=-1, keepdims=True) + 1e-8) / FP8_MAX
        # Divide (exactly as the HPU reference does); this runs only 1/(N/tn)
        # as often as before, so the extra VPU cost is negligible.
        x_fp8 = (x / x_scale).astype(FP8_DTYPE)
        xq_ref[...] = x_fp8.astype(jnp.bfloat16)  # fp8 -> bf16 is exact
        xs_ref[...] = x_scale

    # bf16 x bf16 matmul on the MXU, f32 accumulation.
    # TODO(synk): on v7x the fp8 operands could be fed to the MXU directly
    # (native fp8 rate); bf16 is used here for a single portable kernel.
    acc = jnp.dot(
        xq_ref[...],
        w_ref[...].astype(jnp.bfloat16),
        preferred_element_type=jnp.float32,
    )

    # Dequant epilogue in f32, single cast at the store.
    y = acc * xs_ref[...] * ws_ref[...]
    if has_bias:
        y = y + b_ref[...]
    o_ref[...] = y.astype(o_ref.dtype)


def fp8_linear(x, qweight, w_scale, bias=None, *, tm=256, tn=256):
    """Pallas implementation of Fp8Linear.forward (dynamic input-quant path).

    x       : [..., K]  activations (features last, torch.nn.Linear convention)
    qweight : [N, K]    fp8_e4m3fn quantized weight
    w_scale : [N]       per-output-channel dequant scale (f32)
    bias    : [N]       optional bias
    """
    orig_shape = x.shape
    out_dtype = x.dtype
    K = x.shape[-1]
    x2d = x.reshape(-1, K)
    M = x2d.shape[0]
    N, Kw = qweight.shape
    assert K == Kw, f"in_features mismatch: {K} vs {Kw}"

    # --- tile selection + padding (no divisibility requirements on M / N) ---
    tm = min(tm, _round_up(M, 16))     # bounded row tile, multiple of 16 sublanes
    Mp = _round_up(M, tm)
    tn = min(tn, _round_up(N, 128))    # lane-dense column tile (multiple of 128)
    Np = _round_up(N, tn)

    if Mp != M:
        x2d = jnp.pad(x2d, ((0, Mp - M), (0, 0)))

    # One-time layout change so the rhs tile is (K, tn) and lane-dense; in a
    # real deployment this transpose would be done once at weight-load time.
    w_t = qweight.T                                     # [K, N] fp8
    if Np != N:
        w_t = jnp.pad(w_t, ((0, 0), (0, Np - N)))

    ws = jnp.broadcast_to(jnp.asarray(w_scale, jnp.float32).reshape(-1), (N,))
    ws = jnp.pad(ws, (0, Np - N)).reshape(1, Np)

    has_bias = bias is not None
    in_specs = [
        pl.BlockSpec((tm, K), lambda i, j: (i, 0)),     # activations (full K row)
        pl.BlockSpec((K, tn), lambda i, j: (0, j)),     # fp8 weight tile [K, tn]
        pl.BlockSpec((1, tn), lambda i, j: (0, j)),     # weight scale
    ]
    args = [x2d, w_t, ws]
    if has_bias:
        b = jnp.asarray(bias, jnp.float32).reshape(-1)
        b = jnp.pad(b, (0, Np - N)).reshape(1, Np)
        in_specs.append(pl.BlockSpec((1, tn), lambda i, j: (0, j)))
        args.append(b)

    # VMEM budget: double-buffered inputs/outputs + scratch, with headroom,
    # capped below v7x's 64 MiB physical VMEM.
    x_bytes = x2d.dtype.itemsize
    o_bytes = jnp.dtype(out_dtype).itemsize
    vmem_needed = (
        2 * (tm * K * x_bytes + K * tn * 1 + 3 * tn * 4 + tm * tn * o_bytes)
        + tm * K * 2 + tm * 4
    )
    vmem_limit = min(max(int(vmem_needed) + (2 << 20), 16 << 20), 64 << 20)

    grid = (Mp // tm, Np // tn)
    out2d = pl.pallas_call(
        functools.partial(_fp8_linear_kernel, has_bias=has_bias),
        out_shape=jax.ShapeDtypeStruct((Mp, Np), out_dtype),
        grid_spec=pltpu.PrefetchScalarGridSpec(
            num_scalar_prefetch=0,
            grid=grid,
            in_specs=in_specs,
            out_specs=pl.BlockSpec((tm, tn), lambda i, j: (i, j)),
            scratch_shapes=[
                pltpu.VMEM((tm, K), jnp.bfloat16),   # cached quantized activations
                pltpu.VMEM((tm, 1), jnp.float32),    # cached per-token scales
            ],
        ),
        compiler_params=pltpu.CompilerParams(
            dimension_semantics=("parallel", "arbitrary"),
            vmem_limit_bytes=vmem_limit,
        ),
    )(*args)

    out2d = out2d[:M, :N]
    return out2d.reshape(*orig_shape[:-1], N)


def _reference(x, qweight, w_scale, bias):
    """Pure-JAX replica of apply_block_fp8_linear_hpu_dynamic for validation."""
    K = x.shape[-1]
    x2d = x.reshape(-1, K).astype(jnp.float32)
    x_scale = (jnp.max(jnp.abs(x2d), axis=-1, keepdims=True) + 1e-8) / FP8_MAX
    x_fp8 = (x2d / x_scale).astype(FP8_DTYPE)
    w_deq = qweight.astype(jnp.float32) * jnp.asarray(w_scale, jnp.float32).reshape(-1, 1)
    out = (x_fp8.astype(jnp.float32) @ w_deq.T) * x_scale
    out = out.astype(jnp.bfloat16)
    if bias is not None:
        out = out + bias.astype(jnp.bfloat16)
    return out.astype(x.dtype).reshape(*x.shape[:-1], qweight.shape[0])


if __name__ == "__main__":
    key = jax.random.PRNGKey(0)
    kx, kw, kb, kx2, kw2 = jax.random.split(key, 5)
    dtype = jnp.bfloat16

    # ---- Case 1: bias, tile-aligned shapes (batch=2, seq=8, K=128, N=256) ----
    B, S, K, N = 2, 8, 128, 256
    x = jax.random.normal(kx, (B, S, K), dtype=jnp.float32).astype(dtype)
    w_fp = jax.random.normal(kw, (N, K), dtype=jnp.float32)
    bias = (0.1 * jax.random.normal(kb, (N,), dtype=jnp.float32)).astype(dtype)

    # Deterministic module "checkpoint": per-output-channel fp8 quantized weight
    # (mirrors Fp8Linear.from_fp8 block path -> dynamic_quant over last dim).
    w_scale = (jnp.max(jnp.abs(w_fp), axis=-1, keepdims=True) + 1e-8) / FP8_MAX
    qweight = (w_fp / w_scale).astype(FP8_DTYPE)
    w_scale = w_scale.reshape(-1)

    out = fp8_linear(x, qweight, w_scale, bias=bias)
    jax.block_until_ready(out)
    ref = _reference(x, qweight, w_scale, bias)
    np.testing.assert_allclose(
        np.asarray(out, np.float32), np.asarray(ref, np.float32), rtol=5e-2, atol=5e-2
    )
    assert out.shape == (B, S, N) and out.dtype == dtype

    # ---- Case 2: no bias, non-tile-multiple M (=15) and N (=192) (padding path) ----
    B2, S2, K2, N2 = 3, 5, 128, 192
    x2 = jax.random.normal(kx2, (B2, S2, K2), dtype=jnp.float32).astype(dtype)
    w2 = jax.random.normal(kw2, (N2, K2), dtype=jnp.float32)
    ws2 = (jnp.max(jnp.abs(w2), axis=-1, keepdims=True) + 1e-8) / FP8_MAX
    qw2 = (w2 / ws2).astype(FP8_DTYPE)
    ws2 = ws2.reshape(-1)

    out2 = fp8_linear(x2, qw2, ws2, bias=None)
    jax.block_until_ready(out2)
    ref2 = _reference(x2, qw2, ws2, None)
    np.testing.assert_allclose(
        np.asarray(out2, np.float32), np.asarray(ref2, np.float32), rtol=5e-2, atol=5e-2
    )
    assert out2.shape == (B2, S2, N2) and out2.dtype == dtype

    print("KERNEL_OK")
</pallas_src>

<mosaic_0001>
module attributes {stable_mosaic.version = 11 : i64} {
  func.func @_fp8_linear_kernel(%arg0: i32, %arg1: i32, %arg2: memref<16x128xbf16, #tpu.memory_space<vmem>>, %arg3: memref<128x256xf8E4M3FN, #tpu.memory_space<vmem>>, %arg4: memref<1x256xf32, #tpu.memory_space<vmem>>, %arg5: memref<1x256xf32, #tpu.memory_space<vmem>>, %arg6: memref<16x256xbf16, #tpu.memory_space<vmem>>, %arg7: memref<16x128xbf16, #tpu.memory_space<vmem>>, %arg8: memref<16x1xf32, #tpu.memory_space<vmem>>) attributes {dimension_semantics = [#tpu.dimension_semantics<parallel>, #tpu.dimension_semantics<arbitrary>], iteration_bounds = array<i64: 1, 1>, scalar_prefetch = 0 : i64, scratch_operands = 2 : i64, tpu.core_type = #tpu.core_type<tc>, window_params = [{transform_indices = @transform_0, window_bounds = array<i64: 16, 128>}, {transform_indices = @transform_1, window_bounds = array<i64: 128, 256>}, {transform_indices = @transform_2, window_bounds = array<i64: 1, 256>}, {transform_indices = @transform_3, window_bounds = array<i64: 1, 256>}, {transform_indices = @transform_4, window_bounds = array<i64: 16, 256>}]} {
    %c0_i32 = arith.constant 0 : i32
    %0 = arith.cmpi eq, %arg1, %c0_i32 : i32
    %1 = arith.extui %0 : i1 to i32
    %c0_i32_0 = arith.constant 0 : i32
    %2 = arith.cmpi ne, %1, %c0_i32_0 : i32
    scf.if %2 {
      %c0_12 = arith.constant 0 : index
      %c0_13 = arith.constant 0 : index
      %18 = vector.load %arg2[%c0_12, %c0_13] : memref<16x128xbf16, #tpu.memory_space<vmem>>, vector<16x128xbf16>
      %19 = arith.extf %18 : vector<16x128xbf16> to vector<16x128xf32>
      %20 = math.absf %19 : vector<16x128xf32>
      %cst_14 = arith.constant dense<0xFF800000> : vector<16xf32>
      %21 = vector.multi_reduction <maximumf>, %20, %cst_14 [1] : vector<16x128xf32> to vector<16xf32>
      %22 = vector.shape_cast %21 : vector<16xf32> to vector<16x1xf32>
      %cst_15 = arith.constant 9.99999993E-9 : f32
      %23 = vector.broadcast %cst_15 : f32 to vector<16x1xf32>
      %24 = arith.addf %22, %23 : vector<16x1xf32>
      %cst_16 = arith.constant 4.480000e+02 : f32
      %25 = vector.broadcast %cst_16 : f32 to vector<16x1xf32>
      %26 = arith.divf %24, %25 : vector<16x1xf32>
      %27 = vector.broadcast %26 : vector<16x1xf32> to vector<16x128xf32>
      %28 = arith.divf %19, %27 : vector<16x128xf32>
      %29 = arith.truncf %28 : vector<16x128xf32> to vector<16x128xf8E4M3FN>
      %30 = arith.extf %29 : vector<16x128xf8E4M3FN> to vector<16x128xbf16>
      %c0_17 = arith.constant 0 : index
      %c0_18 = arith.constant 0 : index
      %31 = vector.load %arg7[%c0_17, %c0_18] : memref<16x128xbf16, #tpu.memory_space<vmem>>, vector<16x128xbf16>
      tpu.vector_store %arg7[%c0_17, %c0_18], %30 {strides = array<i32>} : memref<16x128xbf16, #tpu.memory_space<vmem>>, vector<16x128xbf16>,
      %c0_19 = arith.constant 0 : index
      %c0_20 = arith.constant 0 : index
      %32 = vector.load %arg8[%c0_19, %c0_20] : memref<16x1xf32, #tpu.memory_space<vmem>>, vector<16x1xf32>
      tpu.vector_store %arg8[%c0_19, %c0_20], %26 {strides = array<i32>} : memref<16x1xf32, #tpu.memory_space<vmem>>, vector<16x1xf32>,
    } else {
    }
    %c0 = arith.constant 0 : index
    %c0_1 = arith.constant 0 : index
    %3 = vector.load %arg7[%c0, %c0_1] : memref<16x128xbf16, #tpu.memory_space<vmem>>, vector<16x128xbf16>
    %c0_2 = arith.constant 0 : index
    %c0_3 = arith.constant 0 : index
    %4 = vector.load %arg3[%c0_2, %c0_3] : memref<128x256xf8E4M3FN, #tpu.memory_space<vmem>>, vector<128x256xf8E4M3FN>
    %5 = arith.extf %4 : vector<128x256xf8E4M3FN> to vector<128x256xbf16>
    %cst = arith.constant dense<0.000000e+00> : vector<16x256xf32>
    %6 = tpu.matmul %3, %5, %cst {dimension_numbers = #tpu.dot_dimension_numbers<[1], [0], [0], [1], [0, 0, 1, 1], [], []>} : vector<16x128xbf16>, vector<128x256xbf16>, vector<16x256xf32> -> vector<16x256xf32>
    %c0_4 = arith.constant 0 : index
    %c0_5 = arith.constant 0 : index
    %7 = vector.load %arg8[%c0_4, %c0_5] : memref<16x1xf32, #tpu.memory_space<vmem>>, vector<16x1xf32>
    %8 = vector.broadcast %7 : vector<16x1xf32> to vector<16x256xf32>
    %9 = arith.mulf %6, %8 : vector<16x256xf32>
    %c0_6 = arith.constant 0 : index
    %c0_7 = arith.constant 0 : index
    %10 = vector.load %arg4[%c0_6, %c0_7] : memref<1x256xf32, #tpu.memory_space<vmem>>, vector<1x256xf32>
    %11 = vector.broadcast %10 : vector<1x256xf32> to vector<16x256xf32>
    %12 = arith.mulf %9, %11 : vector<16x256xf32>
    %c0_8 = arith.constant 0 : index
    %c0_9 = arith.constant 0 : index
    %13 = vector.load %arg5[%c0_8, %c0_9] : memref<1x256xf32, #tpu.memory_space<vmem>>, vector<1x256xf32>
    %14 = vector.broadcast %13 : vector<1x256xf32> to vector<16x256xf32>
    %15 = arith.addf %12, %14 : vector<16x256xf32>
    %16 = arith.truncf %15 : vector<16x256xf32> to vector<16x256xbf16>
    %c0_10 = arith.constant 0 : index
    %c0_11 = arith.constant 0 : index
    %17 = vector.load %arg6[%c0_10, %c0_11] : memref<16x256xbf16, #tpu.memory_space<vmem>>, vector<16x256xbf16>
    tpu.vector_store %arg6[%c0_10, %c0_11], %16 {strides = array<i32>} : memref<16x256xbf16, #tpu.memory_space<vmem>>, vector<16x256xbf16>,
    return
  }
  func.func @transform_0(%arg0: i32, %arg1: i32) -> (i32, i32) {
    %c0_i32 = arith.constant 0 : i32
    %c0_i32_0 = arith.constant 0 : i32
    return %arg0, %c0_i32 : i32, i32
  }
  func.func @transform_1(%arg0: i32, %arg1: i32) -> (i32, i32) {
    %c0_i32 = arith.constant 0 : i32
    %c0_i32_0 = arith.constant 0 : i32
    return %c0_i32, %arg1 : i32, i32
  }
  func.func @transform_2(%arg0: i32, %arg1: i32) -> (i32, i32) {
    %c0_i32 = arith.constant 0 : i32
    %c0_i32_0 = arith.constant 0 : i32
    return %c0_i32, %arg1 : i32, i32
  }
  func.func @transform_3(%arg0: i32, %arg1: i32) -> (i32, i32) {
    %c0_i32 = arith.constant 0 : i32
    %c0_i32_0 = arith.constant 0 : i32
    return %c0_i32, %arg1 : i32, i32
  }
  func.func @transform_4(%arg0: i32, %arg1: i32) -> (i32, i32) {
    %c0_i32 = arith.constant 0 : i32
    return %arg0, %arg1 : i32, i32
  }
}

</mosaic_0001>

<llo_original>
// kernel: tpu_custom_call.1
$region0: #{tpu_custom_call.1}
  #allocation0 [shape = 'u32[]', space=smem, size = 0x4, offset = 0x4, fixed_abs, tag = 'smem constant byte address 0x4 - core index']
  #allocation1 [shape = 'u32[144,128]{1,0:T(1,128)}', space=vmem, size = 0x12000, scoped, tag = 'internal scratch']
  #allocation2 [shape = 'bf16[16,128]{1,0:T(16,128)(2,1)}', space=vmem, size = 0x1000, scoped, tag = 'scratch operand']
  #allocation3 [shape = 'f32[16,1]{1,0:T(8,128)}', space=vmem, size = 0x2000, scoped, tag = 'scratch operand']
  %s0 = inlined_call_operand.hbm [shape: bf16[16,128], index: 0, kind: input, shape index: {}]
  %s1 = inlined_call_operand.hbm [shape: f8e4m3fn[128,256], index: 1, kind: input, shape index: {}]
  %s2 = inlined_call_operand.vmem [shape: f32[1,256], index: 2, kind: input, shape index: {}]
  %s3 = inlined_call_operand.vmem [shape: f32[1,256], index: 3, kind: input, shape index: {}]
  %s4 = inlined_call_operand.hbm [shape: bf16[16,256], index: 4, kind: output, shape index: {}]
  %s5 = sld [smem:[#allocation0]]
  $region38: #{tpu_custom_call.1} parent=0
    _
  %s7 = ssub.s32 1, %s5
  %s8 = scalar_select 0, %s7, %s5
  $region1: #{tpu_custom_call.1} parent=0
    #allocation4 [shape = 'u8[4096]{0}', space=vmem, size = 0x1000, scoped, tag = 'input window, operand 0, single buffered']
    #allocation5 [shape = 's32[1]{0}', space=sflag, size = 0x4, scoped, tag = 'scoped memory for tpu_custom_call.1']
    #allocation6 [shape = 's32[1]{0}', space=sflag, size = 0x4, scoped, tag = 'scoped memory for tpu_custom_call.1']
    #allocation7 [shape = 'u8[32768]{0}', space=vmem, size = 0x8000, scoped, tag = 'input window, operand 1, single buffered']
    #allocation8 [shape = 's32[1]{0}', space=sflag, size = 0x4, scoped, tag = 'scoped memory for tpu_custom_call.1']
    #allocation9 [shape = 'u8[8192]{0}', space=vmem, size = 0x2000, scoped, tag = 'output window, operand 0, single buffered']
    %9 = vsyncpa [#allocation5], 0
    %10 = vsyncpa [#allocation8], 0
    %11 = vsyncpa [#allocation6], 0
    // Predicated region
    $region2: #{tpu_custom_call.1} parent=1 // pred_check
      _
    $region3: #{tpu_custom_call.1} parent=1 // pred_check_branch
      %13 = sbr.rel (0) target = $region5
    $region4: #{tpu_custom_call.1} parent=1 // pred_region
      %s15 = ssub.s32 128, 128
      %16 = vsyncadd [#allocation5], %s15
      %s17 = sshll.u32 [#allocation4], 4
      %s18 = int_to_ptr.vmem [resolvable:$true] %s17
      %23 = dma.hbm_to_vmem [thread:$0]  %s0, 128, %s18, [#allocation5], 64, 64, 4
    $region5: #{tpu_custom_call.1} parent=1 // pred_fallthru
      _
    // Predicated region
    $region6: #{tpu_custom_call.1} parent=1 // pred_check
      _
    $region7: #{tpu_custom_call.1} parent=1 // pred_check_branch
      %25 = sbr.rel (0) target = $region9
    $region8: #{tpu_custom_call.1} parent=1 // pred_region
      %s27 = ssub.s32 1024, 1024
      %28 = vsyncadd [#allocation8], %s27
      %s29 = sshll.u32 [#allocation7], 4
      %s30 = int_to_ptr.vmem [resolvable:$true] %s29
      %35 = dma.hbm_to_vmem [thread:$0]  %s1, 1024, %s30, [#allocation8], 256, 256, 16
    $region9: #{tpu_custom_call.1} parent=1 // pred_fallthru
      _
    // Predicated region
    $region10: #{tpu_custom_call.1} parent=1 // pred_check
      _
    $region11: #{tpu_custom_call.1} parent=1 // pred_check_branch
      %37 = sbr.rel (0) target = $region13
    $region12: #{tpu_custom_call.1} parent=1 // pred_region
      _
    $region13: #{tpu_custom_call.1} parent=1 // pred_fallthru
      _
    // Predicated region
    $region14: #{tpu_custom_call.1} parent=1 // pred_check
      _
    $region15: #{tpu_custom_call.1} parent=1 // pred_check_branch
      %39 = sbr.rel (0) target = $region17
    $region16: #{tpu_custom_call.1} parent=1 // pred_region
      _
    $region17: #{tpu_custom_call.1} parent=1 // pred_fallthru
      _
    // Predicated region
    $region18: #{tpu_custom_call.1} parent=1 // pred_check
      _
    $region19: #{tpu_custom_call.1} parent=1 // pred_check_branch
      %41 = sbr.rel (0) target = $region21
    $region20: #{tpu_custom_call.1} parent=1 // pred_region
      %42 = dma.done [#allocation5], 128
    $region21: #{tpu_custom_call.1} parent=1 // pred_fallthru
      _
    // Predicated region
    $region22: #{tpu_custom_call.1} parent=1 // pred_check
      _
    $region23: #{tpu_custom_call.1} parent=1 // pred_check_branch
      %44 = sbr.rel (0) target = $region25
    $region24: #{tpu_custom_call.1} parent=1 // pred_region
      %45 = dma.done [#allocation8], 1024
    $region25: #{tpu_custom_call.1} parent=1 // pred_fallthru
      _
    %p47 = scmp.eq.s32.totalorder 0, 0
    // Predicated region
    $region26: #{tpu_custom_call.1} parent=1 // pred_check
      %p48 = pneg %p47
    $region27: #{tpu_custom_call.1} parent=1 // pred_check_branch
      %50 = sbr.rel (%p48) target = $region29
    $region28: #{tpu_custom_call.1} parent=1 // pred_region
      %v51 = vld [vmem:[#allocation4] sm:$0xf]
      %v52 = vld [vmem:[#allocation4 + $0x4] sm:$0xf]
      %v53 = vunpack.c.l.bf16 %v51
      %v54 = vunpack.c.l.bf16 %v52
      %v55 = vand.u32 2147483647, %v53
      %v56 = vand.u32 2147483647, %v54
      %57 = vmax.xlane.f32.xlu0 %v55
      %v58 = vpop.xlane.xlu0 %57
      %59 = vmax.xlane.f32.xlu0 %v56
      %v60 = vpop.xlane.xlu0 %59
      %v61 = vadd.f32 %v58, 1e-08
      %v62 = vadd.f32 %v60, 1e-08
      %v63 = vrcp.pop 448.0
      %v64 = vmul.f32 %v61, %v63
      %v65 = vmul.f32 %v62, %v63
      %v66 = vrcp.pop %v64
      %v67 = vmul.f32 %v53, %v66
      %v68 = vrcp.pop %v65
      %v69 = vmul.f32 %v54, %v68
      %v70 = vpack.c.f32.eXmY %v67, %v69, 61788
      %v74 = vpack.c.b8 %v70, %v70
      %v76 = vunpack.c.l.f8e4m3fn %v74
      %77 = vst [vmem:[#allocation2] sm:$0xff] %v76
      %vm78 = vcmask 7168
      %79 = vst.msk [vmem:[#allocation3] sm:$0xff] %vm78, %v64
      %80 = vst.msk [vmem:[#allocation3 + $0x8] sm:$0xff] %vm78, %v65
    $region29: #{tpu_custom_call.1} parent=1 // pred_fallthru
      _
    %v81 = vld [vmem:[#allocation2] sm:$0xff]
    %v82 = vld [vmem:[#allocation7] sm:$0xff]
    %v83 = vld [vmem:[#allocation7 + $0x8] sm:$0xff]
    %v84 = vld [vmem:[#allocation7 + $0x10] sm:$0xff]
    %v85 = vld [vmem:[#allocation7 + $0x18] sm:$0xff]
    %v86 = vld [vmem:[#allocation7 + $0x20] sm:$0xff]
    %v87 = vld [vmem:[#allocation7 + $0x28] sm:$0xff]
    %v88 = vld [vmem:[#allocation7 + $0x30] sm:$0xff]
    %v89 = vld [vmem:[#allocation7 + $0x38] sm:$0xff]
    %v90 = vunpack.c.l.f8e4m3fn %v82
    %v91 = vunpack.c.l.f8e4m3fn %v83
    %v92 = vunpack.c.h.f8e4m3fn %v82
    %v93 = vunpack.c.h.f8e4m3fn %v83
    %v94 = vunpack.c.l.f8e4m3fn %v84
    %v95 = vunpack.c.l.f8e4m3fn %v85
    %v96 = vunpack.c.h.f8e4m3fn %v84
    %v97 = vunpack.c.h.f8e4m3fn %v85
    %v98 = vunpack.c.l.f8e4m3fn %v86
    %v99 = vunpack.c.l.f8e4m3fn %v87
    %v100 = vunpack.c.h.f8e4m3fn %v86
    %v101 = vunpack.c.h.f8e4m3fn %v87
    %v102 = vunpack.c.l.f8e4m3fn %v88
    %v103 = vunpack.c.l.f8e4m3fn %v89
    %v104 = vunpack.c.h.f8e4m3fn %v88
    %v105 = vunpack.c.h.f8e4m3fn %v89
    %106 = vmatprep.subr.bf16.mxu0 %v91
    %107 = vmatpush1.bf16.msra.mxu0 %v90
    %108 = vmatprep.subr.bf16.mxu0 %v93
    %109 = vmatpush1.bf16.msra.mxu0 %v92
    %110 = vmatprep.subr.bf16.mxu0 %v95
    %111 = vmatpush1.bf16.msra.mxu0 %v94
    %112 = vmatprep.subr.bf16.mxu0 %v97
    %113 = vmatpush1.bf16.msra.mxu0 %v96
    %114 = vmatprep.subr.bf16.mxu0 %v99
    %115 = vmatpush1.bf16.msra.mxu0 %v98
    %116 = vmatprep.subr.bf16.mxu0 %v101
    %117 = vmatpush1.bf16.msra.mxu0 %v100
    %118 = vmatprep.subr.bf16.mxu0 %v103
    %119 = vmatpush1.bf16.msra.mxu0 %v102
    %120 = vmatprep.subr.bf16.mxu0 %v105
    %121 = vmatpush1.bf16.msra.mxu0 %v104
    %122 = vmatprep.subr.bf16.mxu0 0
    %123 = vmatpush1.bf16.msra.mxu0 0
    %124 = vmatprep.subr.bf16.mxu0 0
    %125 = vmatpush1.bf16.msra.mxu0 0
    %126 = vmatprep.subr.bf16.mxu0 0
    %127 = vmatpush1.bf16.msra.mxu0 0
    %128 = vmatprep.subr.bf16.mxu0 0
    %129 = vmatpush1.bf16.msra.mxu0 0
    %130 = vmatprep.subr.bf16.mxu0 0
    %131 = vmatpush1.bf16.msra.mxu0 0
    %132 = vmatprep.subr.bf16.mxu0 0
    %133 = vmatpush1.bf16.msra.mxu0 0
    %134 = vmatprep.subr.bf16.mxu0 0
    %135 = vmatpush1.bf16.msra.mxu0 0
    %136 = vmatprep.subr.bf16.mxu0 0
    %137 = vmatpush1.bf16.msra.mxu0 0
    %138 = vmatprep.mubr.bf16.mxu0 0
    %139 = vmatmul.mubr.bf16.gmra.mrb[0].mxu0 %v81
    %v140 = vpop.f32.mrb[0].mxu0
    %v141 = vadd.f32 0.0, %v140
    %v142 = vpop.f32.mrb[0].mxu0
    %v143 = vadd.f32 0.0, %v142
    %v144 = vpop.f32.mrb[0].mxu0
    %v145 = vadd.f32 0.0, %v144
    %v146 = vpop.f32.mrb[0].mxu0
    %v147 = vadd.f32 0.0, %v146
    %148 = vdwg.mxu0
    %v149 = vld [vmem:[#allocation3] sm:$0xff]
    %v150 = vld [vmem:[#allocation3 + $0x8] sm:$0xff]
    %152 = vset.pattern.permute.xlu0 0
    %153 = vperm.xlu0 %152, %v149
    %v154 = vpop.permute.xlu0 %153
    %157 = vset.pattern.permute.xlu0 0
    %158 = vperm.xlu0 %157, %v150
    %v159 = vpop.permute.xlu0 %158
    %v161 = vmul.f32 %v141, %v154
    %v162 = vmul.f32 %v143, %v154
    %v163 = vmul.f32 %v145, %v159
    %v164 = vmul.f32 %v147, %v159
    %v165 = vld [vmem:[%s2] sm:$0x3]
    %v167 = vlaneseq
    %v168 = vshrl.u32 %v167, 7
    %v169 = vsub.s32 0, %v168
    %v170 = vrot.slane %v165, %v169
    %v171 = vlaneseq
    %v172 = vshrl.u32 %v171, 7
    %v173 = vsub.s32 1, %v172
    %v174 = vrot.slane %v165, %v173
    %v177 = vmul.f32 %v161, %v170
    %v178 = vmul.f32 %v162, %v174
    %v179 = vmul.f32 %v163, %v170
    %v180 = vmul.f32 %v164, %v174
    %v181 = vld [vmem:[%s3] sm:$0x3]
    %v183 = vlaneseq
    %v184 = vshrl.u32 %v183, 7
    %v185 = vsub.s32 0, %v184
    %v186 = vrot.slane %v181, %v185
    %v187 = vlaneseq
    %v188 = vshrl.u32 %v187, 7
    %v189 = vsub.s32 1, %v188
    %v190 = vrot.slane %v181, %v189
    %v193 = vadd.f32 %v177, %v186
    %v194 = vadd.f32 %v178, %v190
    %v195 = vadd.f32 %v179, %v186
    %v196 = vadd.f32 %v180, %v190
    %v197 = vpack.c.bf16 %v195, %v193
    %v198 = vpack.c.bf16 %v196, %v194
    %v201 = vunpack.c.l.b16 %v197
    %v202 = vunpack.c.l.b16 %v198
    %v203 = vunpack.c.h.b16 %v197
    %v204 = vunpack.c.h.b16 %v198
    %v205 = vpack.c.b16 %v202, %v201
    %v206 = vpack.c.b16 %v204, %v203
    %209 = vst [vmem:[#allocation9] sm:$0xff] %v205
    %210 = vst [vmem:[#allocation9 + $0x8] sm:$0xff] %v206
    // Predicated region
    $region30: #{tpu_custom_call.1} parent=1 // pred_check
      _
    $region31: #{tpu_custom_call.1} parent=1 // pred_check_branch
      %212 = sbr.rel (0) target = $region33
    $region32: #{tpu_custom_call.1} parent=1 // pred_region
      %s214 = ssub.s32 256, 256
      %215 = vsyncadd [#allocation6], %s214
      %s216 = sshll.u32 [#allocation9], 4
      %s217 = int_to_ptr.vmem [resolvable:$true] %s216
      %222 = dma.vmem_to_hbm [thread:$0]  %s217, 256, %s4, [#allocation6], 128, 128, 8
    $region33: #{tpu_custom_call.1} parent=1 // pred_fallthru
      _
    // Predicated region
    $region34: #{tpu_custom_call.1} parent=1 // pred_check
      _
    $region35: #{tpu_custom_call.1} parent=1 // pred_check_branch
      %224 = sbr.rel (0) target = $region37
    $region36: #{tpu_custom_call.1} parent=1 // pred_region
      %225 = dma.done [#allocation6], 256
    $region37: #{tpu_custom_call.1} parent=1 // pred_fallthru
      _
    %226 = vsyncpa [#allocation5], 1
    %227 = vsyncpa [#allocation8], 1
    %228 = vsyncpa [#allocation6], 1

</llo_original>
